<compile_context>
chip_gen: v5e
topology: v5e:2x2
jax: 0.10.0
libtpu: 0.0.40
codegen_flags: <defaults>
</compile_context>

<pallas_src>
import functools

import jax
import jax.numpy as jnp
from jax.experimental import pallas as pl
from jax.experimental.pallas import tpu as pltpu

RAW_LANES = 128            # lane-dense width of the fused second-layer output
OUT_LANES = 2 * RAW_LANES  # packed output slab: [ raw | logp ]


def _actor_critic_kernel(x_ref, w1_ref, b1_ref, w2_ref, b2_ref, out_ref, *,
                         num_actions):
    x = x_ref[...]                                                    # (TB, N) f32

    # Fused first layer (critic | actor): one MXU op, then ReLU on the VPU.
    h = jnp.dot(x, w1_ref[...], preferred_element_type=jnp.float32) + b1_ref[...]
    h = jnp.maximum(h, 0.0)                                           # (TB, 2H)

    # Fused block-diagonal second layer, padded to 128 lanes: one MXU op.
    # raw lanes: [ value | logits(A) | exact zeros ... ]
    raw = jnp.dot(h, w2_ref[...], preferred_element_type=jnp.float32) + b2_ref[...]

    # Categorical(logits=...) normalization: log_softmax over the logits lanes only.
    # exp/log -> EUP, row max/sum -> XLU: free filler under the MXU latency.
    lane = jax.lax.broadcasted_iota(jnp.int32, raw.shape, 1)
    is_logit = (lane >= 1) & (lane < 1 + num_actions)
    masked = jnp.where(is_logit, raw, -jnp.inf)
    m = jnp.max(masked, axis=-1, keepdims=True)
    lse = m + jnp.log(jnp.sum(jnp.exp(masked - m), axis=-1, keepdims=True))
    logp = jnp.where(is_logit, raw - lse, 0.0)                        # (TB, 128)

    # Single lane-dense (TB, 256) store: [ raw | logp ].
    out_ref[...] = jnp.concatenate([raw, logp], axis=-1)


def fuse_params(params):
    """Fuse PyTorch-style per-head Linear params into the packed kernel layout."""
    w1c, b1c, w2c, b2c, w1a, b1a, w2a, b2a = params
    n_in, hidden = w1c.shape
    num_actions = w2a.shape[1]
    assert 1 + num_actions <= RAW_LANES

    w1 = jnp.concatenate([w1c, w1a], axis=1)          # (N, 2H)
    b1 = jnp.concatenate([b1c, b1a], axis=1)          # (1, 2H)

    w2 = jnp.zeros((2 * hidden, RAW_LANES), jnp.float32)
    w2 = w2.at[:hidden, 0:1].set(w2c)                 # critic column (value)
    w2 = w2.at[hidden:, 1:1 + num_actions].set(w2a)   # actor columns (logits)
    b2 = jnp.zeros((1, RAW_LANES), jnp.float32)
    b2 = b2.at[:, 0:1].set(b2c)
    b2 = b2.at[:, 1:1 + num_actions].set(b2a)
    return (w1, b1, w2, b2), num_actions


def actor_critic_forward(x, fused_params, num_actions):
    """x: (B, C, H, W) or (C, H, W) float32 observation.
    Returns (value, logits, log_probs) matching the PyTorch module + Categorical."""
    w1, b1, w2, b2 = fused_params

    batched = x.ndim > 3
    if not batched:
        x = x[None, ...]
    B = x.shape[0]
    x_flat = x.astype(jnp.float32).reshape(B, -1)     # nn.Flatten()
    n_in = x_flat.shape[1]

    # Pad batch to a sublane multiple (8) and tile rows; weights stay VMEM-resident.
    b8 = max(8, -(-B // 8) * 8)
    tb = min(b8, 512)
    bp = -(-b8 // tb) * tb
    if bp != B:
        x_flat = jnp.pad(x_flat, ((0, bp - B), (0, 0)))

    kernel = functools.partial(_actor_critic_kernel, num_actions=num_actions)
    slab = pl.pallas_call(
        kernel,
        out_shape=jax.ShapeDtypeStruct((bp, OUT_LANES), jnp.float32),
        grid_spec=pltpu.PrefetchScalarGridSpec(
            num_scalar_prefetch=0,
            grid=(bp // tb,),
            in_specs=[
                pl.BlockSpec((tb, n_in), lambda i: (i, 0)),
                pl.BlockSpec(w1.shape, lambda i: (0, 0)),
                pl.BlockSpec(b1.shape, lambda i: (0, 0)),
                pl.BlockSpec(w2.shape, lambda i: (0, 0)),
                pl.BlockSpec(b2.shape, lambda i: (0, 0)),
            ],
            out_specs=pl.BlockSpec((tb, OUT_LANES), lambda i: (i, 0)),
        ),
        compiler_params=pltpu.CompilerParams(
            dimension_semantics=("parallel",)),
    )(x_flat, w1, b1, w2, b2)

    slab = slab[:B]
    value = slab[:, 0:1]
    logits = slab[:, 1:1 + num_actions]
    logp = slab[:, RAW_LANES + 1:RAW_LANES + 1 + num_actions]
    if not batched:
        value, logits, logp = value[0], logits[0], logp[0]
    return value, logits, logp


def init_params(key, num_inputs, hidden_size, num_actions):
    """Deterministic PyTorch-style (uniform +-1/sqrt(fan_in)) Linear init.
    Weights stored as (in, out)."""
    def linear(k, fan_in, fan_out):
        kw, kb = jax.random.split(k)
        bound = 1.0 / jnp.sqrt(fan_in)
        w = jax.random.uniform(kw, (fan_in, fan_out), jnp.float32, -bound, bound)
        b = jax.random.uniform(kb, (1, fan_out), jnp.float32, -bound, bound)
        return w, b

    k1, k2, k3, k4 = jax.random.split(key, 4)
    w1c, b1c = linear(k1, num_inputs, hidden_size)
    w2c, b2c = linear(k2, hidden_size, 1)
    w1a, b1a = linear(k3, num_inputs, hidden_size)
    w2a, b2a = linear(k4, hidden_size, num_actions)
    return (w1c, b1c, w2c, b2c, w1a, b1a, w2a, b2a)


def reference_forward(x, params):
    """Pure-JAX reference for correctness checking."""
    (w1c, b1c, w2c, b2c, w1a, b1a, w2a, b2a) = params
    B = x.shape[0]
    xf = x.astype(jnp.float32).reshape(B, -1)
    hc = jax.nn.relu(jnp.dot(xf, w1c, precision="highest") + b1c)
    value = jnp.dot(hc, w2c, precision="highest") + b2c
    ha = jax.nn.relu(jnp.dot(xf, w1a, precision="highest") + b1a)
    logits = jnp.dot(ha, w2a, precision="highest") + b2a
    logp = jax.nn.log_softmax(logits, axis=-1)
    return value, logits, logp


if __name__ == "__main__":
    # Small image-like observation: (C=4, H=2, W=2) -> num_inputs = 16 < 100 -> MLP branch.
    batch = 2
    obs_shape = (4, 2, 2)
    num_inputs = 4 * 2 * 2
    hidden_size = 32
    num_actions = 8

    key = jax.random.PRNGKey(0)
    k_params, k_x, k_big = jax.random.split(key, 3)
    params = init_params(k_params, num_inputs, hidden_size, num_actions)
    fused, n_act = fuse_params(params)
    assert n_act == num_actions

    x = jax.random.normal(k_x, (batch,) + obs_shape, dtype=jnp.float32)

    value, logits, log_probs = actor_critic_forward(x, fused, num_actions)
    jax.block_until_ready((value, logits, log_probs))

    # correctness check against pure-JAX reference (B=2, padded path)
    v_ref, l_ref, lp_ref = reference_forward(x, params)
    assert value.shape == (batch, 1)
    assert logits.shape == (batch, num_actions)
    assert log_probs.shape == (batch, num_actions)
    assert jnp.allclose(value, v_ref, atol=1e-5, rtol=1e-5)
    assert jnp.allclose(logits, l_ref, atol=1e-5, rtol=1e-5)
    assert jnp.allclose(log_probs, lp_ref, atol=1e-5, rtol=1e-5)

    # unbatched path (matches the module's squeeze(0) behavior)
    v1, l1, lp1 = actor_critic_forward(x[0], fused, num_actions)
    jax.block_until_ready((v1, l1, lp1))
    assert v1.shape == (1,) and l1.shape == (num_actions,) and lp1.shape == (num_actions,)

    # larger-batch path exercising the row grid (padding + multiple tiles)
    big_b = 1029
    x_big = jax.random.normal(k_big, (big_b,) + obs_shape, dtype=jnp.float32)
    vb, lb, lpb = actor_critic_forward(x_big, fused, num_actions)
    jax.block_until_ready((vb, lb, lpb))
    vbr, lbr, lpbr = reference_forward(x_big, params)
    assert jnp.allclose(vb, vbr, atol=1e-5, rtol=1e-5)
    assert jnp.allclose(lb, lbr, atol=1e-5, rtol=1e-5)
    assert jnp.allclose(lpb, lpbr, atol=1e-5, rtol=1e-5)

    print("KERNEL_OK")
</pallas_src>

<mosaic_0001>
module attributes {stable_mosaic.version = 11 : i64} {
  func.func @_actor_critic_kernel(%arg0: i32, %arg1: memref<8x16xf32, #tpu.memory_space<vmem>>, %arg2: memref<16x64xf32, #tpu.memory_space<vmem>>, %arg3: memref<1x64xf32, #tpu.memory_space<vmem>>, %arg4: memref<64x128xf32, #tpu.memory_space<vmem>>, %arg5: memref<1x128xf32, #tpu.memory_space<vmem>>, %arg6: memref<8x256xf32, #tpu.memory_space<vmem>>) attributes {dimension_semantics = [#tpu.dimension_semantics<parallel>], iteration_bounds = array<i64: 1>, scalar_prefetch = 0 : i64, scratch_operands = 0 : i64, tpu.core_type = #tpu.core_type<tc>, window_params = [{transform_indices = @transform_0, window_bounds = array<i64: 8, 16>}, {pipeline_mode = #tpu.pipeline_mode<synchronous>, transform_indices = @transform_1, window_bounds = array<i64: 16, 64>}, {pipeline_mode = #tpu.pipeline_mode<synchronous>, transform_indices = @transform_2, window_bounds = array<i64: 1, 64>}, {pipeline_mode = #tpu.pipeline_mode<synchronous>, transform_indices = @transform_3, window_bounds = array<i64: 64, 128>}, {pipeline_mode = #tpu.pipeline_mode<synchronous>, transform_indices = @transform_4, window_bounds = array<i64: 1, 128>}, {transform_indices = @transform_5, window_bounds = array<i64: 8, 256>}]} {
    %c0 = arith.constant 0 : index
    %c0_0 = arith.constant 0 : index
    %0 = vector.load %arg1[%c0, %c0_0] : memref<8x16xf32, #tpu.memory_space<vmem>>, vector<8x16xf32>
    %c0_1 = arith.constant 0 : index
    %c0_2 = arith.constant 0 : index
    %1 = vector.load %arg2[%c0_1, %c0_2] : memref<16x64xf32, #tpu.memory_space<vmem>>, vector<16x64xf32>
    %cst = arith.constant dense<0.000000e+00> : vector<8x64xf32>
    %2 = tpu.matmul %0, %1, %cst {dimension_numbers = #tpu.dot_dimension_numbers<[1], [0], [0], [1], [0, 0, 1, 1], [], []>} : vector<8x16xf32>, vector<16x64xf32>, vector<8x64xf32> -> vector<8x64xf32>
    %c0_3 = arith.constant 0 : index
    %c0_4 = arith.constant 0 : index
    %3 = vector.load %arg3[%c0_3, %c0_4] : memref<1x64xf32, #tpu.memory_space<vmem>>, vector<1x64xf32>
    %4 = vector.broadcast %3 : vector<1x64xf32> to vector<8x64xf32>
    %5 = arith.addf %2, %4 : vector<8x64xf32>
    %cst_5 = arith.constant 0.000000e+00 : f32
    %6 = vector.broadcast %cst_5 : f32 to vector<8x64xf32>
    %7 = arith.maximumf %5, %6 : vector<8x64xf32>
    %c0_6 = arith.constant 0 : index
    %c0_7 = arith.constant 0 : index
    %8 = vector.load %arg4[%c0_6, %c0_7] : memref<64x128xf32, #tpu.memory_space<vmem>>, vector<64x128xf32>
    %cst_8 = arith.constant dense<0.000000e+00> : vector<8x128xf32>
    %9 = tpu.matmul %7, %8, %cst_8 {dimension_numbers = #tpu.dot_dimension_numbers<[1], [0], [0], [1], [0, 0, 1, 1], [], []>} : vector<8x64xf32>, vector<64x128xf32>, vector<8x128xf32> -> vector<8x128xf32>
    %c0_9 = arith.constant 0 : index
    %c0_10 = arith.constant 0 : index
    %10 = vector.load %arg5[%c0_9, %c0_10] : memref<1x128xf32, #tpu.memory_space<vmem>>, vector<1x128xf32>
    %11 = vector.broadcast %10 : vector<1x128xf32> to vector<8x128xf32>
    %12 = arith.addf %9, %11 : vector<8x128xf32>
    %13 = tpu.iota {dimensions = array<i32: 1>} : vector<8x128xi32>
    %c1_i32 = arith.constant 1 : i32
    %14 = vector.broadcast %c1_i32 : i32 to vector<8x128xi32>
    %15 = arith.cmpi sge, %13, %14 : vector<8x128xi32>
    %c9_i32 = arith.constant 9 : i32
    %16 = vector.broadcast %c9_i32 : i32 to vector<8x128xi32>
    %17 = arith.cmpi slt, %13, %16 : vector<8x128xi32>
    %18 = arith.andi %15, %17 : vector<8x128xi1>
    %cst_11 = arith.constant 0xFF800000 : f32
    %19 = vector.broadcast %cst_11 : f32 to vector<8x128xf32>
    %20 = arith.select %18, %12, %19 : vector<8x128xi1>, vector<8x128xf32>
    %cst_12 = arith.constant dense<0xFF800000> : vector<8xf32>
    %21 = vector.multi_reduction <maximumf>, %20, %cst_12 [1] : vector<8x128xf32> to vector<8xf32>
    %22 = vector.shape_cast %21 : vector<8xf32> to vector<8x1xf32>
    %23 = vector.broadcast %22 : vector<8x1xf32> to vector<8x128xf32>
    %24 = arith.subf %20, %23 : vector<8x128xf32>
    %25 = math.exp %24 : vector<8x128xf32>
    %cst_13 = arith.constant dense<0.000000e+00> : vector<8xf32>
    %26 = vector.multi_reduction <add>, %25, %cst_13 [1] : vector<8x128xf32> to vector<8xf32>
    %27 = vector.shape_cast %26 : vector<8xf32> to vector<8x1xf32>
    %28 = math.log %27 : vector<8x1xf32>
    %29 = arith.addf %22, %28 : vector<8x1xf32>
    %30 = vector.broadcast %29 : vector<8x1xf32> to vector<8x128xf32>
    %31 = arith.subf %12, %30 : vector<8x128xf32>
    %cst_14 = arith.constant 0.000000e+00 : f32
    %32 = vector.broadcast %cst_14 : f32 to vector<8x128xf32>
    %33 = arith.select %18, %31, %32 : vector<8x128xi1>, vector<8x128xf32>
    %34 = tpu.concatenate %12, %33 in 1 : vector<8x128xf32>, vector<8x128xf32> -> vector<8x256xf32>
    %c0_15 = arith.constant 0 : index
    %c0_16 = arith.constant 0 : index
    %35 = vector.load %arg6[%c0_15, %c0_16] : memref<8x256xf32, #tpu.memory_space<vmem>>, vector<8x256xf32>
    tpu.vector_store %arg6[%c0_15, %c0_16], %34 {strides = array<i32>} : memref<8x256xf32, #tpu.memory_space<vmem>>, vector<8x256xf32>,
    return
  }
  func.func @transform_0(%arg0: i32) -> (i32, i32) {
    %c0_i32 = arith.constant 0 : i32
    %c0_i32_0 = arith.constant 0 : i32
    return %arg0, %c0_i32 : i32, i32
  }
  func.func @transform_1(%arg0: i32) -> (i32, i32) {
    %c0_i32 = arith.constant 0 : i32
    %c0_i32_0 = arith.constant 0 : i32
    %c0_i32_1 = arith.constant 0 : i32
    return %c0_i32, %c0_i32_0 : i32, i32
  }
  func.func @transform_2(%arg0: i32) -> (i32, i32) {
    %c0_i32 = arith.constant 0 : i32
    %c0_i32_0 = arith.constant 0 : i32
    %c0_i32_1 = arith.constant 0 : i32
    return %c0_i32, %c0_i32_0 : i32, i32
  }
  func.func @transform_3(%arg0: i32) -> (i32, i32) {
    %c0_i32 = arith.constant 0 : i32
    %c0_i32_0 = arith.constant 0 : i32
    %c0_i32_1 = arith.constant 0 : i32
    return %c0_i32, %c0_i32_0 : i32, i32
  }
  func.func @transform_4(%arg0: i32) -> (i32, i32) {
    %c0_i32 = arith.constant 0 : i32
    %c0_i32_0 = arith.constant 0 : i32
    %c0_i32_1 = arith.constant 0 : i32
    return %c0_i32, %c0_i32_0 : i32, i32
  }
  func.func @transform_5(%arg0: i32) -> (i32, i32) {
    %c0_i32 = arith.constant 0 : i32
    %c0_i32_0 = arith.constant 0 : i32
    return %arg0, %c0_i32 : i32, i32
  }
}

</mosaic_0001>

<llo_original>
// kernel: tpu_custom_call.1
$region0: #{tpu_custom_call.1}
  #allocation0 [shape = 'u32[]', space=smem, size = 0x4, offset = 0x4, fixed_abs, tag = 'smem constant byte address 0x4 - core index']
  #allocation1 [shape = 'u32[72,128]{1,0:T(1,128)}', space=vmem, size = 0x9000, scoped, tag = 'internal scratch']
  %s0 = inlined_call_operand.hbm [shape: f32[8,16], index: 0, kind: input, shape index: {}]
  %s1 = inlined_call_operand.hbm [shape: f32[16,64], index: 1, kind: input, shape index: {}]
  %s2 = inlined_call_operand.vmem [shape: f32[1,64], index: 2, kind: input, shape index: {}]
  %s3 = inlined_call_operand.hbm [shape: f32[64,128], index: 3, kind: input, shape index: {}]
  %s4 = inlined_call_operand.vmem [shape: f32[1,128], index: 4, kind: input, shape index: {}]
  %s5 = inlined_call_operand.hbm [shape: f32[8,256], index: 5, kind: output, shape index: {}]
  %s6 = sld [smem:[#allocation0]]
  $region42: #{tpu_custom_call.1} parent=0
    _
  %s8 = ssub.s32 1, %s6
  %s9 = scalar_select 0, %s8, %s6
  $region1: #{tpu_custom_call.1} parent=0
    #allocation2 [shape = 'u8[4096]{0}', space=vmem, size = 0x1000, scoped, tag = 'input window, operand 0, single buffered']
    #allocation3 [shape = 's32[1]{0}', space=sflag, size = 0x4, scoped, tag = 'scoped memory for tpu_custom_call.1']
    #allocation4 [shape = 's32[1]{0}', space=sflag, size = 0x4, scoped, tag = 'scoped memory for tpu_custom_call.1']
    #allocation5 [shape = 'u8[8192]{0}', space=vmem, size = 0x2000, scoped, tag = 'input window, operand 1, single buffered']
    #allocation6 [shape = 's32[1]{0}', space=sflag, size = 0x4, scoped, tag = 'scoped memory for tpu_custom_call.1']
    #allocation7 [shape = 'u8[32768]{0}', space=vmem, size = 0x8000, scoped, tag = 'input window, operand 3, single buffered']
    #allocation8 [shape = 'u8[8192]{0}', space=vmem, size = 0x2000, scoped, tag = 'output window, operand 0, single buffered']
    %10 = vsyncpa [#allocation3], 0
    %11 = vsyncpa [#allocation6], 0
    %12 = vsyncpa [#allocation4], 0
    // Predicated region
    $region2: #{tpu_custom_call.1} parent=1 // pred_check
      _
    $region3: #{tpu_custom_call.1} parent=1 // pred_check_branch
      %14 = sbr.rel (0) target = $region5
    $region4: #{tpu_custom_call.1} parent=1 // pred_region
      %16 = vsyncadd [#allocation3], 0
      %s18 = sshll.u32 %s0, 4
      %s19 = int_to_ptr.hbm [resolvable:$true] %s18
      %s20 = sshll.u32 [#allocation2], 4
      %s21 = int_to_ptr.vmem [resolvable:$true] %s20
      %23 = dma.hbm_to_vmem [thread:$0]  %s19, 128, %s21, [#allocation3]
    $region5: #{tpu_custom_call.1} parent=1 // pred_fallthru
      _
    // Predicated region
    $region6: #{tpu_custom_call.1} parent=1 // pred_check
      _
    $region7: #{tpu_custom_call.1} parent=1 // pred_check_branch
      %25 = sbr.rel (0) target = $region9
    $region8: #{tpu_custom_call.1} parent=1 // pred_region
      %27 = vsyncadd [#allocation6], 0
      %s28 = sshll.u32 %s1, 4
      %s29 = int_to_ptr.hbm [resolvable:$true] %s28
      %s30 = sshll.u32 [#allocation5], 4
      %s31 = int_to_ptr.vmem [resolvable:$true] %s30
      %36 = dma.hbm_to_vmem [thread:$0]  %s29, 256, %s31, [#allocation6], 128, 128, 8
    $region9: #{tpu_custom_call.1} parent=1 // pred_fallthru
      _
    // Predicated region
    $region10: #{tpu_custom_call.1} parent=1 // pred_check
      _
    $region11: #{tpu_custom_call.1} parent=1 // pred_check_branch
      %38 = sbr.rel (0) target = $region13
    $region12: #{tpu_custom_call.1} parent=1 // pred_region
      _
    $region13: #{tpu_custom_call.1} parent=1 // pred_fallthru
      _
    // Predicated region
    $region14: #{tpu_custom_call.1} parent=1 // pred_check
      _
    $region15: #{tpu_custom_call.1} parent=1 // pred_check_branch
      %40 = sbr.rel (0) target = $region17
    $region16: #{tpu_custom_call.1} parent=1 // pred_region
      %42 = vsyncadd [#allocation6], 0
      %s43 = sshll.u32 %s3, 4
      %s44 = int_to_ptr.hbm [resolvable:$true] %s43
      %s45 = sshll.u32 [#allocation7], 4
      %s46 = int_to_ptr.vmem [resolvable:$true] %s45
      %51 = dma.hbm_to_vmem [thread:$0]  %s44, 1024, %s46, [#allocation6], 128, 128, 8
    $region17: #{tpu_custom_call.1} parent=1 // pred_fallthru
      _
    // Predicated region
    $region18: #{tpu_custom_call.1} parent=1 // pred_check
      _
    $region19: #{tpu_custom_call.1} parent=1 // pred_check_branch
      %53 = sbr.rel (0) target = $region21
    $region20: #{tpu_custom_call.1} parent=1 // pred_region
      _
    $region21: #{tpu_custom_call.1} parent=1 // pred_fallthru
      _
    // Predicated region
    $region22: #{tpu_custom_call.1} parent=1 // pred_check
      _
    $region23: #{tpu_custom_call.1} parent=1 // pred_check_branch
      %55 = sbr.rel (0) target = $region25
    $region24: #{tpu_custom_call.1} parent=1 // pred_region
      %57 = dma.done [#allocation3], 128
    $region25: #{tpu_custom_call.1} parent=1 // pred_fallthru
      _
    // Predicated region
    $region26: #{tpu_custom_call.1} parent=1 // pred_check
      _
    $region27: #{tpu_custom_call.1} parent=1 // pred_check_branch
      %59 = sbr.rel (0) target = $region29
    $region28: #{tpu_custom_call.1} parent=1 // pred_region
      %61 = dma.done [#allocation6], 256
    $region29: #{tpu_custom_call.1} parent=1 // pred_fallthru
      _
    // Predicated region
    $region30: #{tpu_custom_call.1} parent=1 // pred_check
      _
    $region31: #{tpu_custom_call.1} parent=1 // pred_check_branch
      %63 = sbr.rel (0) target = $region33
    $region32: #{tpu_custom_call.1} parent=1 // pred_region
      %65 = dma.done [#allocation6], 1024
    $region33: #{tpu_custom_call.1} parent=1 // pred_fallthru
      _
    %v66 = vld [vmem:[#allocation2] sm:$0xff]
    %v67 = vld [vmem:[#allocation5] sm:$0xff]
    %v68 = vld [vmem:[#allocation5 + $0x8] sm:$0xff]
    %v69 = vld [vmem:[%s2] sm:$0x1]
    %v71 = vperm.slane %v69, 0
    %vm73 = vcmask 130048
    %v75 = vsel %vm73, %v66, 0
    %77 = vmatpush.msra.mxu0 0.0
    %78 = vmatpush.msra.mxu0 0.0
    %79 = vmatpush.msra.mxu0 0.0
    %80 = vmatpush.msra.mxu0 0.0
    %81 = vmatpush.msra.mxu0 0.0
    %82 = vmatpush.msra.mxu0 0.0
    %83 = vmatpush.msra.mxu0 0.0
    %84 = vmatpush.msra.mxu0 0.0
    %85 = vmatpush.msra.mxu0 0.0
    %86 = vmatpush.msra.mxu0 0.0
    %87 = vmatpush.msra.mxu0 0.0
    %88 = vmatpush.msra.mxu0 0.0
    %89 = vmatpush.msra.mxu0 0.0
    %90 = vmatpush.msra.mxu0 0.0
    %91 = vmatpush.msra.mxu0 %v68
    %92 = vmatpush.msra.mxu0 %v67
    %93 = vmatmul.f32.gmra.mxu0 %v75
    %v94 = vpop.f32.mrf.mxu0
    %v95 = vadd.f32 %v71, %v94
    %96 = vdwg.mxu0
    %v97 = vmax.f32 %v95, 0.0
    %v98 = vld [vmem:[#allocation7] sm:$0xff]
    %v99 = vld [vmem:[#allocation7 + $0x8] sm:$0xff]
    %v100 = vld [vmem:[#allocation7 + $0x10] sm:$0xff]
    %v101 = vld [vmem:[#allocation7 + $0x18] sm:$0xff]
    %v102 = vld [vmem:[#allocation7 + $0x20] sm:$0xff]
    %v103 = vld [vmem:[#allocation7 + $0x28] sm:$0xff]
    %v104 = vld [vmem:[#allocation7 + $0x30] sm:$0xff]
    %v105 = vld [vmem:[#allocation7 + $0x38] sm:$0xff]
    %v106 = vld [vmem:[%s4] sm:$0x1]
    %v108 = vperm.slane %v106, 0
    %vm110 = vcmask 523264
    %v112 = vsel %vm110, %v97, 0
    %114 = vmatpush.msra.mxu0 0.0
    %115 = vmatpush.msra.mxu0 0.0
    %116 = vmatpush.msra.mxu0 0.0
    %117 = vmatpush.msra.mxu0 0.0
    %118 = vmatpush.msra.mxu0 0.0
    %119 = vmatpush.msra.mxu0 0.0
    %120 = vmatpush.msra.mxu0 0.0
    %121 = vmatpush.msra.mxu0 0.0
    %122 = vmatpush.msra.mxu0 %v105
    %123 = vmatpush.msra.mxu0 %v104
    %124 = vmatpush.msra.mxu0 %v103
    %125 = vmatpush.msra.mxu0 %v102
    %126 = vmatpush.msra.mxu0 %v101
    %127 = vmatpush.msra.mxu0 %v100
    %128 = vmatpush.msra.mxu0 %v99
    %129 = vmatpush.msra.mxu0 %v98
    %130 = vmatmul.f32.gmra.mxu0 %v112
    %v131 = vpop.f32.mrf.mxu0
    %v132 = vadd.f32 %v108, %v131
    %133 = vdwg.mxu0
    %v134 = vlaneseq
    %v135 = vand.u32 %v134, 127
    %vm136 = vcmp.ge.s32.totalorder %v135, 1
    %vm137 = vcmp.lt.s32.totalorder %v135, 9
    %vm138 = vmand %vm136, %vm137
    %v139 = vsel %vm138, %v132, -inf
    %140 = vmax.xlane.f32.xlu0 %v139
    %v141 = vpop.xlane.xlu0 %140
    %v142 = vsub.f32 %v139, %v141
    %v143 = vmul.f32 %v142, 1.442695
    %v144 = vpow.pop %v143
    %145 = vadd.xlane.f32.xlu0 %v144
    %v146 = vpop.xlane.xlu0 %145
    %v147 = vlog2.pop %v146
    %v148 = vmul.f32 %v147, 0.6931472
    %v149 = vadd.f32 %v141, %v148
    %v150 = vsub.f32 %v132, %v149
    %v151 = vsel %vm138, %v150, 0.0
    %152 = vst [vmem:[#allocation8] sm:$0xff] %v132
    %153 = vst [vmem:[#allocation8 + $0x8] sm:$0xff] %v151
    // Predicated region
    $region34: #{tpu_custom_call.1} parent=1 // pred_check
      _
    $region35: #{tpu_custom_call.1} parent=1 // pred_check_branch
      %155 = sbr.rel (0) target = $region37
    $region36: #{tpu_custom_call.1} parent=1 // pred_region
      %157 = vsyncadd [#allocation4], 0
      %s159 = sshll.u32 [#allocation8], 4
      %s160 = int_to_ptr.vmem [resolvable:$true] %s159
      %s161 = sshll.u32 %s5, 4
      %s162 = int_to_ptr.hbm [resolvable:$true] %s161
      %164 = dma.vmem_to_hbm [thread:$0]  %s160, 256, %s162, [#allocation4]
    $region37: #{tpu_custom_call.1} parent=1 // pred_fallthru
      _
    // Predicated region
    $region38: #{tpu_custom_call.1} parent=1 // pred_check
      _
    $region39: #{tpu_custom_call.1} parent=1 // pred_check_branch
      %166 = sbr.rel (0) target = $region41
    $region40: #{tpu_custom_call.1} parent=1 // pred_region
      %168 = dma.done [#allocation4], 256
    $region41: #{tpu_custom_call.1} parent=1 // pred_fallthru
      _
    %169 = vsyncpa [#allocation3], 1
    %170 = vsyncpa [#allocation6], 1
    %171 = vsyncpa [#allocation4], 1

</llo_original>
